<compile_context>
chip_gen: v7x
topology: tpu7x:2x2x1
jax: 0.10.0
libtpu: 0.0.40
codegen_flags: <defaults>
</compile_context>

<pallas_src>
import jax
import jax.numpy as jnp
from jax.experimental import pallas as pl
from jax.experimental.pallas import tpu as pltpu


def _round_up(x, m):
    return (x + m - 1) // m * m


def _cdiv(a, b):
    return (a + b - 1) // b


# ---------------------------------------------------------------------------
# Kernels
# ---------------------------------------------------------------------------

def _nl_kernel(scale_ref, x_ref, wt_ref, b_ref, o_ref):
    # scale_ref: (1, 1)        SMEM f32   (g / ||V||_F)
    # x_ref:     (tm, in_dim)  VMEM (input dtype; cast to weight dtype here)
    # wt_ref:    (in_dim, tn)  VMEM bf16  (V^T tile)
    # b_ref:     (1, tn)       VMEM f32
    # o_ref:     (tm, tn)      VMEM out_dtype
    w = wt_ref[...]
    y = jnp.dot(x_ref[...].astype(w.dtype), w,
                preferred_element_type=jnp.float32)
    y = y * scale_ref[0, 0] + b_ref[...]
    o_ref[...] = jnp.maximum(y, 0.0).astype(o_ref.dtype)


def _nl_kernel_ktiled(scale_ref, x_ref, wt_ref, b_ref, o_ref, acc_ref):
    # Same as above but the contraction (in_dim) axis is tiled over grid
    # axis 2 with an f32 VMEM accumulator (init at k==0, finalize at k==last).
    k = pl.program_id(2)

    @pl.when(k == 0)
    def _():
        acc_ref[...] = jnp.zeros_like(acc_ref)

    w = wt_ref[...]
    acc_ref[...] += jnp.dot(x_ref[...].astype(w.dtype), w,
                            preferred_element_type=jnp.float32)

    @pl.when(k == pl.num_programs(2) - 1)
    def _():
        y = acc_ref[...] * scale_ref[0, 0] + b_ref[...]
        o_ref[...] = jnp.maximum(y, 0.0).astype(o_ref.dtype)


# ---------------------------------------------------------------------------
# Tiling plan
# ---------------------------------------------------------------------------

def _plan_tiles(B, in_dim, out_dim, x_itemsize, w_itemsize, out_itemsize, *,
                tm_max, tn_max, tk_max, resident_weight_bytes,
                vmem_budget_bytes):
    out_pad = _round_up(out_dim, 128)

    # Batch tile: minimize last-tile padding, keep 16-sublane alignment.
    n_row = _cdiv(B, tm_max)
    tm = min(_round_up(_cdiv(B, n_row), 16), _round_up(tm_max, 16))
    b_pad = _round_up(B, tm)
    nb = b_pad // tm

    def step_bytes(tk_eff, tn, with_acc):
        x_t = tm * tk_eff * x_itemsize
        w_t = tk_eff * tn * w_itemsize
        o_t = tm * tn * out_itemsize
        acc = tm * tn * 4 if with_acc else 0
        bias = 8 * tn * 4                    # (1, tn) pads to 8 sublanes
        return 2 * (x_t + w_t) + 2 * o_t + acc + 2 * bias

    tk = None
    # 1) whole padded weight resident in VMEM -> single HBM fetch.
    if (in_dim * out_pad * w_itemsize <= resident_weight_bytes
            and step_bytes(in_dim, out_pad, False) <= vmem_budget_bytes):
        mode, tn = "simple", out_pad
    else:
        # largest multiple of 128 dividing out_pad that is <= tn_max
        tn, t = 128, 128
        while t <= min(tn_max, out_pad):
            if out_pad % t == 0:
                tn = t
            t += 128
        if step_bytes(in_dim, tn, False) <= vmem_budget_bytes:
            mode = "simple"
        else:
            # 3) tile the contraction axis so VMEM is bounded for any in_dim.
            mode = "ktiled"
            tk = min(_round_up(tk_max, 128), _round_up(in_dim, 128))
            while tk > 128 and step_bytes(tk, tn, True) > vmem_budget_bytes:
                tk -= 128

    nj = out_pad // tn
    # v7x has 2 TensorCores; ensure >=2 parallel grid cells when possible so
    # the "parallel" axes can be sharded across them.
    if nb * nj == 1:
        if out_pad % 256 == 0:
            tn, nj = out_pad // 2, 2
        elif tm % 32 == 0:
            tm = tm // 2
            nb = b_pad // tm

    in_pad = in_dim if tk is None else _round_up(in_dim, tk)
    need = step_bytes(in_dim if tk is None else tk, tn, mode == "ktiled")
    vmem_limit = min(48 * 1024 * 1024, 2 * need + 4 * 1024 * 1024)

    # When N is tiled, re-stream the *smaller* operand: if the weight is
    # larger than the activations, make the batch axis the fastest-changing
    # one so each weight tile is fetched once instead of once per row tile.
    col_outer = (in_dim * out_pad * w_itemsize) > (b_pad * in_dim * x_itemsize)

    return dict(mode=mode, tm=tm, tn=tn, tk=tk, b_pad=b_pad, in_pad=in_pad,
                out_pad=out_pad, nb=nb, nj=nj,
                nk=None if tk is None else in_pad // tk,
                col_outer=col_outer, vmem_limit=vmem_limit)


# ---------------------------------------------------------------------------
# Public API
# ---------------------------------------------------------------------------

def prepare_nonlinear_params(v, g, b, *, compute_dtype=jnp.bfloat16):
    """One-time parameter prep. Cache / close over the result; do NOT redo
    this per call (it is a full HBM pass over the weight).

    v: (out_dim, in_dim) weight-norm direction; g: scalar gain; b: (out_dim,).
    """
    out_dim, in_dim = v.shape
    out_pad = _round_up(out_dim, 128)
    v32 = v.astype(jnp.float32)
    scale = (jnp.asarray(g, jnp.float32) /
             jnp.sqrt(jnp.sum(v32 * v32))).reshape(1, 1)
    wt = jnp.pad(v.T.astype(compute_dtype), ((0, 0), (0, out_pad - out_dim)))
    bias = jnp.pad(b.astype(jnp.float32).reshape(1, out_dim),
                   ((0, 0), (0, out_pad - out_dim)))
    return {"scale": scale, "wt": wt, "bias": bias, "out_dim": out_dim}


def nonlinear_layer_apply(x, params, *, out_dtype=jnp.float32,
                          slice_output=True, tm_max=256, tn_max=512,
                          tk_max=512, resident_weight_bytes=12 << 20,
                          vmem_budget_bytes=24 << 20):
    """relu(x @ (g * V / ||V||_F).T + b) using pre-prepared params."""
    scale, wt, bias = params["scale"], params["wt"], params["bias"]
    out_dim = params["out_dim"]
    B, in_dim = x.shape
    assert wt.shape[0] == in_dim
    out_pad = wt.shape[1]

    plan = _plan_tiles(B, in_dim, out_dim,
                       jnp.dtype(x.dtype).itemsize,
                       jnp.dtype(wt.dtype).itemsize,
                       jnp.dtype(out_dtype).itemsize,
                       tm_max=tm_max, tn_max=tn_max, tk_max=tk_max,
                       resident_weight_bytes=resident_weight_bytes,
                       vmem_budget_bytes=vmem_budget_bytes)
    tm, tn, b_pad = plan["tm"], plan["tn"], plan["b_pad"]

    xp = x
    if b_pad != B:
        xp = jnp.pad(xp, ((0, b_pad - B), (0, 0)))

    if plan["mode"] == "simple":
        nb, nj = plan["nb"], plan["nj"]
        if plan["col_outer"]:
            grid = (nj, nb)
            x_map = lambda j, i: (i, 0)
            w_map = lambda j, i: (0, j)
            b_map = lambda j, i: (0, j)
            o_map = lambda j, i: (i, j)
        else:
            grid = (nb, nj)
            x_map = lambda i, j: (i, 0)
            w_map = lambda i, j: (0, j)
            b_map = lambda i, j: (0, j)
            o_map = lambda i, j: (i, j)
        out = pl.pallas_call(
            _nl_kernel,
            out_shape=jax.ShapeDtypeStruct((b_pad, out_pad), out_dtype),
            grid=grid,
            in_specs=[
                pl.BlockSpec(memory_space=pltpu.MemorySpace.SMEM),  # scale
                pl.BlockSpec((tm, in_dim), x_map),                  # x rows
                pl.BlockSpec((in_dim, tn), w_map),                  # V^T cols
                pl.BlockSpec((1, tn), b_map),                       # bias
            ],
            out_specs=pl.BlockSpec((tm, tn), o_map),
            compiler_params=pltpu.CompilerParams(
                dimension_semantics=("parallel", "parallel"),
                vmem_limit_bytes=plan["vmem_limit"]),
        )(scale, xp, wt, bias)
    else:
        tk, nk, nb, nj = plan["tk"], plan["nk"], plan["nb"], plan["nj"]
        in_pad = plan["in_pad"]
        wtk = wt
        if in_pad != in_dim:
            # TODO(synk): for very large in_dim, pre-pad K inside
            # prepare_nonlinear_params so this pad is not an extra HBM pass.
            xp = jnp.pad(xp, ((0, 0), (0, in_pad - in_dim)))
            wtk = jnp.pad(wt, ((0, in_pad - in_dim), (0, 0)))
        out = pl.pallas_call(
            _nl_kernel_ktiled,
            out_shape=jax.ShapeDtypeStruct((b_pad, out_pad), out_dtype),
            grid=(nb, nj, nk),
            in_specs=[
                pl.BlockSpec(memory_space=pltpu.MemorySpace.SMEM),
                pl.BlockSpec((tm, tk), lambda i, j, k: (i, k)),
                pl.BlockSpec((tk, tn), lambda i, j, k: (k, j)),
                pl.BlockSpec((1, tn), lambda i, j, k: (0, j)),
            ],
            out_specs=pl.BlockSpec((tm, tn), lambda i, j, k: (i, j)),
            scratch_shapes=[pltpu.VMEM((tm, tn), jnp.float32)],
            compiler_params=pltpu.CompilerParams(
                dimension_semantics=("parallel", "parallel", "arbitrary"),
                vmem_limit_bytes=plan["vmem_limit"]),
        )(scale, xp, wtk, bias)

    if slice_output and (b_pad != B or out_pad != out_dim):
        out = out[:B, :out_dim]
    return out


def nonlinear_layer_pallas(x, v, g, b, *, compute_dtype=jnp.bfloat16,
                           **apply_kwargs):
    """Convenience wrapper. For repeated calls with fixed weights, call
    prepare_nonlinear_params once and reuse it with nonlinear_layer_apply."""
    params = prepare_nonlinear_params(v, g, b, compute_dtype=compute_dtype)
    return nonlinear_layer_apply(x, params, **apply_kwargs)


def nonlinear_layer_ref(x, v, g, b):
    w_eff = g * v / jnp.sqrt(jnp.sum(v * v))
    y = jnp.dot(x, w_eff.T, precision=jax.lax.Precision.HIGHEST) + b
    return jnp.maximum(y, 0.0)


if __name__ == "__main__":
    key = jax.random.PRNGKey(0)
    kx, kv, kb, k2x, k2v, k2b = jax.random.split(key, 6)

    # ---- Test 1: module-sized problem, hoisted param prep, f32 output ----
    B, in_dim, out_dim = 8, 32, 32
    x = jax.random.normal(kx, (B, in_dim), dtype=jnp.float32)
    # PyTorch weight_norm init (dim=None): v = original weight, g = ||v||_F.
    v = jax.random.normal(kv, (out_dim, in_dim), dtype=jnp.float32) * 0.1
    g = jnp.sqrt(jnp.sum(v * v))
    b = jax.random.uniform(kb, (out_dim,), dtype=jnp.float32,
                           minval=-0.1, maxval=0.1)

    params = prepare_nonlinear_params(v, g, b)      # do once, reuse per call
    out = jax.block_until_ready(nonlinear_layer_apply(x, params))
    assert out.shape == (B, out_dim)

    # Tight check vs a reference matching the kernel numerics (bf16 operands,
    # f32 accumulation, scale applied post-matmul in f32).
    scale = g / jnp.sqrt(jnp.sum(v * v))
    x_bf = x.astype(jnp.bfloat16).astype(jnp.float32)
    wt_bf = v.T.astype(jnp.bfloat16).astype(jnp.float32)
    ref_bf16 = jnp.maximum(
        jnp.dot(x_bf, wt_bf, precision=jax.lax.Precision.HIGHEST) * scale + b,
        0.0)
    assert jnp.allclose(out, ref_bf16, atol=1e-4, rtol=1e-4), \
        "mismatch vs bf16-matched reference"

    # Loose check vs the full-f32 reference (bf16 operand rounding only).
    ref = nonlinear_layer_ref(x, v, g, b)
    assert jnp.allclose(out, ref, atol=2e-2, rtol=2e-2), \
        "mismatch vs f32 reference"

    # ---- Test 2: force the K-tiled path (bounded VMEM) + bf16 output ----
    B2, in2, out2 = 24, 384, 256
    x2 = jax.random.normal(k2x, (B2, in2), dtype=jnp.float32)
    v2 = jax.random.normal(k2v, (out2, in2), dtype=jnp.float32) * 0.05
    g2 = jnp.sqrt(jnp.sum(v2 * v2))
    b2 = jax.random.uniform(k2b, (out2,), dtype=jnp.float32,
                            minval=-0.1, maxval=0.1)

    out2_arr = nonlinear_layer_pallas(
        x2, v2, g2, b2, out_dtype=jnp.bfloat16,
        resident_weight_bytes=0, vmem_budget_bytes=512 * 1024)
    out2_arr = jax.block_until_ready(out2_arr)
    assert out2_arr.shape == (B2, out2)

    scale2 = g2 / jnp.sqrt(jnp.sum(v2 * v2))
    x2_bf = x2.astype(jnp.bfloat16).astype(jnp.float32)
    wt2_bf = v2.T.astype(jnp.bfloat16).astype(jnp.float32)
    ref2 = jnp.maximum(
        jnp.dot(x2_bf, wt2_bf, precision=jax.lax.Precision.HIGHEST) * scale2
        + b2, 0.0)
    assert jnp.allclose(out2_arr.astype(jnp.float32), ref2,
                        atol=2e-2, rtol=2e-2), \
        "mismatch on K-tiled / bf16-output path"

    print("KERNEL_OK")
</pallas_src>

<mosaic_0001>
module attributes {stable_mosaic.version = 11 : i64} {
  func.func @_nl_kernel(%arg0: i32, %arg1: i32, %arg2: memref<1x1xf32, #tpu.memory_space<smem>>, %arg3: memref<16x32xf32, #tpu.memory_space<vmem>>, %arg4: memref<32x128xbf16, #tpu.memory_space<vmem>>, %arg5: memref<1x128xf32, #tpu.memory_space<vmem>>, %arg6: memref<16x128xf32, #tpu.memory_space<vmem>>) attributes {dimension_semantics = [#tpu.dimension_semantics<parallel>, #tpu.dimension_semantics<parallel>], iteration_bounds = array<i64: 1, 1>, scalar_prefetch = 0 : i64, scratch_operands = 0 : i64, tpu.core_type = #tpu.core_type<tc>, window_params = [{transform_indices = @transform_0, window_bounds = array<i64: 1, 1>}, {transform_indices = @transform_1, window_bounds = array<i64: 16, 32>}, {transform_indices = @transform_2, window_bounds = array<i64: 32, 128>}, {transform_indices = @transform_3, window_bounds = array<i64: 1, 128>}, {transform_indices = @transform_4, window_bounds = array<i64: 16, 128>}]} {
    %c0 = arith.constant 0 : index
    %c0_0 = arith.constant 0 : index
    %0 = vector.load %arg4[%c0, %c0_0] : memref<32x128xbf16, #tpu.memory_space<vmem>>, vector<32x128xbf16>
    %c0_1 = arith.constant 0 : index
    %c0_2 = arith.constant 0 : index
    %1 = vector.load %arg3[%c0_1, %c0_2] : memref<16x32xf32, #tpu.memory_space<vmem>>, vector<16x32xf32>
    %2 = arith.truncf %1 : vector<16x32xf32> to vector<16x32xbf16>
    %cst = arith.constant dense<0.000000e+00> : vector<16x128xf32>
    %3 = tpu.matmul %2, %0, %cst {dimension_numbers = #tpu.dot_dimension_numbers<[1], [0], [0], [1], [0, 0, 1, 1], [], []>} : vector<16x32xbf16>, vector<32x128xbf16>, vector<16x128xf32> -> vector<16x128xf32>
    %c0_3 = arith.constant 0 : index
    %c0_4 = arith.constant 0 : index
    %4 = memref.load %arg2[%c0_3, %c0_4] : memref<1x1xf32, #tpu.memory_space<smem>>
    %5 = vector.broadcast %4 : f32 to vector<16x128xf32>
    %6 = arith.mulf %3, %5 : vector<16x128xf32>
    %c0_5 = arith.constant 0 : index
    %c0_6 = arith.constant 0 : index
    %7 = vector.load %arg5[%c0_5, %c0_6] : memref<1x128xf32, #tpu.memory_space<vmem>>, vector<1x128xf32>
    %8 = vector.broadcast %7 : vector<1x128xf32> to vector<16x128xf32>
    %9 = arith.addf %6, %8 : vector<16x128xf32>
    %cst_7 = arith.constant 0.000000e+00 : f32
    %10 = vector.broadcast %cst_7 : f32 to vector<16x128xf32>
    %11 = arith.maximumf %9, %10 : vector<16x128xf32>
    %c0_8 = arith.constant 0 : index
    %c0_9 = arith.constant 0 : index
    %12 = vector.load %arg6[%c0_8, %c0_9] : memref<16x128xf32, #tpu.memory_space<vmem>>, vector<16x128xf32>
    tpu.vector_store %arg6[%c0_8, %c0_9], %11 {strides = array<i32>} : memref<16x128xf32, #tpu.memory_space<vmem>>, vector<16x128xf32>,
    return
  }
  func.func @transform_0(%arg0: i32, %arg1: i32) -> (i32, i32) {
    %c0_i32 = arith.constant 0 : i32
    %c0_i32_0 = arith.constant 0 : i32
    %c0_i32_1 = arith.constant 0 : i32
    return %c0_i32, %c0_i32_0 : i32, i32
  }
  func.func @transform_1(%arg0: i32, %arg1: i32) -> (i32, i32) {
    %c0_i32 = arith.constant 0 : i32
    %c0_i32_0 = arith.constant 0 : i32
    return %arg1, %c0_i32 : i32, i32
  }
  func.func @transform_2(%arg0: i32, %arg1: i32) -> (i32, i32) {
    %c0_i32 = arith.constant 0 : i32
    %c0_i32_0 = arith.constant 0 : i32
    return %c0_i32, %arg0 : i32, i32
  }
  func.func @transform_3(%arg0: i32, %arg1: i32) -> (i32, i32) {
    %c0_i32 = arith.constant 0 : i32
    %c0_i32_0 = arith.constant 0 : i32
    return %c0_i32, %arg0 : i32, i32
  }
  func.func @transform_4(%arg0: i32, %arg1: i32) -> (i32, i32) {
    %c0_i32 = arith.constant 0 : i32
    return %arg1, %arg0 : i32, i32
  }
}

</mosaic_0001>

<llo_original>
// kernel: tpu_custom_call.1
$region0: #{tpu_custom_call.1}
  #allocation0 [shape = 'u32[]', space=smem, size = 0x4, offset = 0x4, fixed_abs, tag = 'smem constant byte address 0x4 - core index']
  #allocation1 [shape = 'u32[144,128]{1,0:T(1,128)}', space=vmem, size = 0x12000, scoped, tag = 'internal scratch']
  #allocation2 [shape = 'f32[1,1]{1,0:T(1,128)S(6)}', space=smem, size = 0x200, scoped, tag = 'scoped memory for tpu_custom_call.1']
  %s0 = inlined_call_operand.<no memory space> [shape: f32[1,1], index: 0, kind: input, shape index: {}]
  %s1 = inlined_call_operand.hbm [shape: f32[16,32], index: 1, kind: input, shape index: {}]
  %s2 = inlined_call_operand.hbm [shape: bf16[32,128], index: 2, kind: input, shape index: {}]
  %s3 = inlined_call_operand.vmem [shape: f32[1,128], index: 3, kind: input, shape index: {}]
  %s4 = inlined_call_operand.hbm [shape: f32[16,128], index: 4, kind: output, shape index: {}]
  %s5 = sld [smem:[#allocation0]]
  $region34: #{tpu_custom_call.1} parent=0
    _
  %s7 = ssub.s32 1, %s5
  %s8 = scalar_select 0, %s7, %s5
  %9 = sst [smem:[#allocation2]] %s0
  $region1: #{tpu_custom_call.1} parent=0
    #allocation3 [shape = 'u8[8192]{0}', space=vmem, size = 0x2000, scoped, tag = 'input window, operand 1, single buffered']
    #allocation4 [shape = 's32[1]{0}', space=sflag, size = 0x4, scoped, tag = 'scoped memory for tpu_custom_call.1']
    #allocation5 [shape = 's32[1]{0}', space=sflag, size = 0x4, scoped, tag = 'scoped memory for tpu_custom_call.1']
    #allocation6 [shape = 'u8[8192]{0}', space=vmem, size = 0x2000, scoped, tag = 'input window, operand 2, single buffered']
    #allocation7 [shape = 's32[1]{0}', space=sflag, size = 0x4, scoped, tag = 'scoped memory for tpu_custom_call.1']
    #allocation8 [shape = 'u8[8192]{0}', space=vmem, size = 0x2000, scoped, tag = 'output window, operand 0, single buffered']
    %10 = vsyncpa [#allocation4], 0
    %11 = vsyncpa [#allocation7], 0
    %12 = vsyncpa [#allocation5], 0
    // Predicated region
    $region2: #{tpu_custom_call.1} parent=1 // pred_check
      _
    $region3: #{tpu_custom_call.1} parent=1 // pred_check_branch
      %14 = sbr.rel (0) target = $region5
    $region4: #{tpu_custom_call.1} parent=1 // pred_region
      _
    $region5: #{tpu_custom_call.1} parent=1 // pred_fallthru
      _
    // Predicated region
    $region6: #{tpu_custom_call.1} parent=1 // pred_check
      _
    $region7: #{tpu_custom_call.1} parent=1 // pred_check_branch
      %16 = sbr.rel (0) target = $region9
    $region8: #{tpu_custom_call.1} parent=1 // pred_region
      %s18 = ssub.s32 256, 256
      %19 = vsyncadd [#allocation4], %s18
      %s20 = sshll.u32 [#allocation3], 4
      %s21 = int_to_ptr.vmem [resolvable:$true] %s20
      %26 = dma.hbm_to_vmem [thread:$0]  %s1, 256, %s21, [#allocation4], 128, 128, 8
    $region9: #{tpu_custom_call.1} parent=1 // pred_fallthru
      _
    // Predicated region
    $region10: #{tpu_custom_call.1} parent=1 // pred_check
      _
    $region11: #{tpu_custom_call.1} parent=1 // pred_check_branch
      %28 = sbr.rel (0) target = $region13
    $region12: #{tpu_custom_call.1} parent=1 // pred_region
      %s30 = ssub.s32 256, 256
      %31 = vsyncadd [#allocation7], %s30
      %s32 = sshll.u32 [#allocation6], 4
      %s33 = int_to_ptr.vmem [resolvable:$true] %s32
      %38 = dma.hbm_to_vmem [thread:$0]  %s2, 256, %s33, [#allocation7], 64, 64, 4
    $region13: #{tpu_custom_call.1} parent=1 // pred_fallthru
      _
    // Predicated region
    $region14: #{tpu_custom_call.1} parent=1 // pred_check
      _
    $region15: #{tpu_custom_call.1} parent=1 // pred_check_branch
      %40 = sbr.rel (0) target = $region17
    $region16: #{tpu_custom_call.1} parent=1 // pred_region
      _
    $region17: #{tpu_custom_call.1} parent=1 // pred_fallthru
      _
    // Predicated region
    $region18: #{tpu_custom_call.1} parent=1 // pred_check
      _
    $region19: #{tpu_custom_call.1} parent=1 // pred_check_branch
      %42 = sbr.rel (0) target = $region21
    $region20: #{tpu_custom_call.1} parent=1 // pred_region
      %43 = dma.done [#allocation4], 256
    $region21: #{tpu_custom_call.1} parent=1 // pred_fallthru
      _
    // Predicated region
    $region22: #{tpu_custom_call.1} parent=1 // pred_check
      _
    $region23: #{tpu_custom_call.1} parent=1 // pred_check_branch
      %45 = sbr.rel (0) target = $region25
    $region24: #{tpu_custom_call.1} parent=1 // pred_region
      %46 = dma.done [#allocation7], 256
    $region25: #{tpu_custom_call.1} parent=1 // pred_fallthru
      _
    %v48 = vld [vmem:[#allocation6] sm:$0xf]
    %v49 = vld [vmem:[#allocation6 + $0x4] sm:$0xf]
    %v50 = vld [vmem:[#allocation6 + $0x8] sm:$0xf]
    %v51 = vld [vmem:[#allocation6 + $0xc] sm:$0xf]
    %v52 = vld [vmem:[#allocation3] sm:$0xff]
    %v53 = vld [vmem:[#allocation3 + $0x8] sm:$0xff]
    %v54 = vpack.c.bf16 %v53, %v52
    %v59 = vunpack.c.l.b16 %v48
    %v60 = vunpack.c.l.b16 %v49
    %v61 = vunpack.c.l.b16 %v50
    %v62 = vunpack.c.l.b16 %v51
    %v63 = vpack.c.b16 %v60, %v59
    %v64 = vpack.c.b16 %v62, %v61
    %vm67 = vcmask 261120
    %v69 = vsel %vm67, %v54, 0
    %71 = vmatprep.subr.bf16.mxu0 0
    %72 = vmatpush1.bf16.msra.mxu0 %v63
    %73 = vmatprep.subr.bf16.mxu0 0
    %74 = vmatpush1.bf16.msra.mxu0 %v64
    %75 = vmatprep.subr.bf16.mxu0 0
    %76 = vmatpush1.bf16.msra.mxu0 0
    %77 = vmatprep.subr.bf16.mxu0 0
    %78 = vmatpush1.bf16.msra.mxu0 0
    %79 = vmatprep.subr.bf16.mxu0 0
    %80 = vmatpush1.bf16.msra.mxu0 0
    %81 = vmatprep.subr.bf16.mxu0 0
    %82 = vmatpush1.bf16.msra.mxu0 0
    %83 = vmatprep.subr.bf16.mxu0 0
    %84 = vmatpush1.bf16.msra.mxu0 0
    %85 = vmatprep.subr.bf16.mxu0 0
    %86 = vmatpush1.bf16.msra.mxu0 0
    %87 = vmatprep.subr.bf16.mxu0 0
    %88 = vmatpush1.bf16.msra.mxu0 0
    %89 = vmatprep.subr.bf16.mxu0 0
    %90 = vmatpush1.bf16.msra.mxu0 0
    %91 = vmatprep.subr.bf16.mxu0 0
    %92 = vmatpush1.bf16.msra.mxu0 0
    %93 = vmatprep.subr.bf16.mxu0 0
    %94 = vmatpush1.bf16.msra.mxu0 0
    %95 = vmatprep.subr.bf16.mxu0 0
    %96 = vmatpush1.bf16.msra.mxu0 0
    %97 = vmatprep.subr.bf16.mxu0 0
    %98 = vmatpush1.bf16.msra.mxu0 0
    %99 = vmatprep.subr.bf16.mxu0 0
    %100 = vmatpush1.bf16.msra.mxu0 0
    %101 = vmatprep.subr.bf16.mxu0 0
    %102 = vmatpush1.bf16.msra.mxu0 0
    %103 = vmatprep.mubr.bf16.mxu0 0
    %104 = vmatmul.mubr.bf16.gmra.mrb[0].mxu0 %v69
    %v105 = vpop.f32.mrb[0].mxu0
    %v106 = vadd.f32 0.0, %v105
    %v107 = vpop.f32.mrb[0].mxu0
    %v108 = vpop.f32.mrb[0].mxu0
    %v109 = vadd.f32 0.0, %v108
    %v110 = vpop.f32.mrb[0].mxu0
    %111 = vdwg.mxu0
    %s112 = sld [smem:[#allocation2]]
    %v113 = vstv %s112
    %v114 = vmul.f32 %v106, %v113
    %v115 = vmul.f32 %v109, %v113
    %v116 = vld [vmem:[%s3] sm:$0x1]
    %v118 = vlaneseq
    %v119 = vshrl.u32 %v118, 7
    %v120 = vsub.s32 0, %v119
    %v121 = vrot.slane %v116, %v120
    %v123 = vadd.f32 %v114, %v121
    %v124 = vadd.f32 %v115, %v121
    %v125 = vmax.f32 %v123, 0.0
    %v126 = vmax.f32 %v124, 0.0
    %127 = vst [vmem:[#allocation8] sm:$0xff] %v125
    %128 = vst [vmem:[#allocation8 + $0x8] sm:$0xff] %v126
    // Predicated region
    $region26: #{tpu_custom_call.1} parent=1 // pred_check
      _
    $region27: #{tpu_custom_call.1} parent=1 // pred_check_branch
      %130 = sbr.rel (0) target = $region29
    $region28: #{tpu_custom_call.1} parent=1 // pred_region
      %s132 = ssub.s32 256, 256
      %133 = vsyncadd [#allocation5], %s132
      %s134 = sshll.u32 [#allocation8], 4
      %s135 = int_to_ptr.vmem [resolvable:$true] %s134
      %140 = dma.vmem_to_hbm [thread:$0]  %s135, 256, %s4, [#allocation5], 128, 128, 8
    $region29: #{tpu_custom_call.1} parent=1 // pred_fallthru
      _
    // Predicated region
    $region30: #{tpu_custom_call.1} parent=1 // pred_check
      _
    $region31: #{tpu_custom_call.1} parent=1 // pred_check_branch
      %142 = sbr.rel (0) target = $region33
    $region32: #{tpu_custom_call.1} parent=1 // pred_region
      %143 = dma.done [#allocation5], 256
    $region33: #{tpu_custom_call.1} parent=1 // pred_fallthru
      _
    %144 = vsyncpa [#allocation4], 1
    %145 = vsyncpa [#allocation7], 1
    %146 = vsyncpa [#allocation5], 1

</llo_original>
